<compile_context>
chip_gen: v5e
topology: v5e:2x2
jax: 0.10.0
libtpu: 0.0.40
codegen_flags: <defaults>
</compile_context>

<pallas_src>
import functools

import jax
import jax.numpy as jnp
from jax.experimental import pallas as pl
from jax.experimental.pallas import tpu as pltpu

_LANES = 128
_SUBLANES = 8
# Below this many elements, the plain fused-XLA path beats a pallas_call
# (dispatch + per-step overhead dominate a 2-mul-add/elem op).
_PALLAS_MIN_ELEMS = 1 << 17  # 131072


def _index_kernel(idx_ref, out_ref, *, num_clips: int, num_crops: int):
    # idx_ref: (3, rows, 128) int32; rows is a multiple of 8, so idx_ref[k] is
    # a sublane+lane dense (rows, 128) slab -> pure VPU mul-adds, unmasked vst.
    out_ref[...] = (
        idx_ref[0] * (num_clips * num_crops)
        + idx_ref[1] * num_crops
        + idx_ref[2]
    )


def _compute_index_pallas(video_index, clip_index, aug_index, num_clips, num_crops):
    """Pallas path (worth it only for large B; always correct)."""
    b = video_index.shape[0]
    # Rows per grid tile: minimal (8) for tiny inputs, 512 rows (256 KiB output
    # slab, ~2 MiB double-buffered total) for large ones — safe on v5e/v6e/v7x.
    rows_tile = _SUBLANES if b <= _SUBLANES * _LANES else 512
    tile_elems = rows_tile * _LANES
    bp = ((b + tile_elems - 1) // tile_elems) * tile_elems
    sp = bp // _LANES  # total rows; multiple of rows_tile (and of 8)

    # One stack + one pad (single reshape after) instead of zeros + 3 updates.
    stacked = jnp.stack([video_index, clip_index, aug_index]).astype(jnp.int32)
    stacked = jnp.pad(stacked, ((0, 0), (0, bp - b)))        # (3, Bp)
    stacked = stacked.reshape(3, sp, _LANES)                 # (3, Sp, 128)

    kernel = functools.partial(
        _index_kernel, num_clips=num_clips, num_crops=num_crops
    )
    out = pl.pallas_call(
        kernel,
        out_shape=jax.ShapeDtypeStruct((sp, _LANES), jnp.int32),
        grid=(sp // rows_tile,),
        in_specs=[pl.BlockSpec((3, rows_tile, _LANES), lambda i: (0, i, 0))],
        out_specs=pl.BlockSpec((rows_tile, _LANES), lambda i: (i, 0)),
        compiler_params=pltpu.CompilerParams(
            dimension_semantics=("parallel",)
        ),
    )(stacked)
    return out.reshape(-1)[:b]


def _compute_index_jnp(video_index, clip_index, aug_index, num_clips, num_crops):
    """Default path: one fused elementwise XLA op, zero extra dispatches."""
    vi = video_index.astype(jnp.int32)
    ci = clip_index.astype(jnp.int32)
    ai = aug_index.astype(jnp.int32)
    return vi * (num_clips * num_crops) + ci * num_crops + ai


def dict_to_tuple(x, num_clips: int, num_crops: int, *, force_pallas: bool = False):
    """JAX equivalent of DictToTuple.forward.

    x: dict with keys 'video', 'label', 'video_index', 'clip_index', 'aug_index'.
    Returns (video, label, index, {}).
    """
    vi, ci, ai = x["video_index"], x["clip_index"], x["aug_index"]
    if force_pallas or vi.shape[0] >= _PALLAS_MIN_ELEMS:
        index = _compute_index_pallas(vi, ci, ai, num_clips, num_crops)
    else:
        index = _compute_index_jnp(vi, ci, ai, num_clips, num_crops)
    return (x["video"], x["label"], index, {})


if __name__ == "__main__":
    key = jax.random.PRNGKey(0)
    k_video, k_label, k_vi, k_ci, k_ai = jax.random.split(key, 5)

    B, C, T, H, W = 2, 3, 4, 16, 16
    num_clips, num_crops = 2, 3

    x = {
        # layout: NCTHW (pass-through, no compute)
        "video": jax.random.normal(k_video, (B, C, T, H, W), dtype=jnp.float32),
        "label": jax.random.randint(k_label, (B,), 0, 10, dtype=jnp.int32),
        "video_index": jax.random.randint(k_vi, (B,), 0, 100, dtype=jnp.int32),
        "clip_index": jax.random.randint(k_ci, (B,), 0, num_clips, dtype=jnp.int32),
        "aug_index": jax.random.randint(k_ai, (B,), 0, num_crops, dtype=jnp.int32),
    }

    ref_index = (
        x["video_index"] * num_clips * num_crops
        + x["clip_index"] * num_crops
        + x["aug_index"]
    )

    # Default path (plain fused jnp — the recommended route for small B).
    video, label, index, extra = dict_to_tuple(x, num_clips, num_crops)
    jax.block_until_ready(index)
    assert index.shape == (B,) and index.dtype == jnp.int32
    assert jnp.array_equal(index, ref_index)
    assert jnp.array_equal(video, x["video"])
    assert jnp.array_equal(label, x["label"])
    assert extra == {}

    # Pallas path (forced, to exercise the kernel on-device at small shapes).
    _, _, index_pl, _ = dict_to_tuple(x, num_clips, num_crops, force_pallas=True)
    jax.block_until_ready(index_pl)
    assert index_pl.shape == (B,) and index_pl.dtype == jnp.int32
    assert jnp.array_equal(index_pl, ref_index)

    print("KERNEL_OK")
</pallas_src>

<mosaic_0001>
module attributes {stable_mosaic.version = 11 : i64} {
  func.func @_index_kernel(%arg0: i32, %arg1: memref<3x8x128xi32, #tpu.memory_space<vmem>>, %arg2: memref<8x128xi32, #tpu.memory_space<vmem>>) attributes {dimension_semantics = [#tpu.dimension_semantics<parallel>], iteration_bounds = array<i64: 1>, scalar_prefetch = 0 : i64, scratch_operands = 0 : i64, tpu.core_type = #tpu.core_type<tc>, window_params = [{transform_indices = @transform_0, window_bounds = array<i64: 3, 8, 128>}, {transform_indices = @transform_1, window_bounds = array<i64: 8, 128>}]} {
    %c0 = arith.constant 0 : index
    %c0_0 = arith.constant 0 : index
    %c0_1 = arith.constant 0 : index
    %0 = vector.load %arg1[%c0, %c0_0, %c0_1] : memref<3x8x128xi32, #tpu.memory_space<vmem>>, vector<1x8x128xi32>
    %1 = vector.shape_cast %0 : vector<1x8x128xi32> to vector<8x128xi32>
    %c6_i32 = arith.constant 6 : i32
    %2 = vector.broadcast %c6_i32 : i32 to vector<8x128xi32>
    %3 = arith.muli %1, %2 : vector<8x128xi32>
    %c1 = arith.constant 1 : index
    %c0_2 = arith.constant 0 : index
    %c0_3 = arith.constant 0 : index
    %4 = vector.load %arg1[%c1, %c0_2, %c0_3] : memref<3x8x128xi32, #tpu.memory_space<vmem>>, vector<1x8x128xi32>
    %5 = vector.shape_cast %4 : vector<1x8x128xi32> to vector<8x128xi32>
    %c3_i32 = arith.constant 3 : i32
    %6 = vector.broadcast %c3_i32 : i32 to vector<8x128xi32>
    %7 = arith.muli %5, %6 : vector<8x128xi32>
    %8 = arith.addi %3, %7 : vector<8x128xi32>
    %c2 = arith.constant 2 : index
    %c0_4 = arith.constant 0 : index
    %c0_5 = arith.constant 0 : index
    %9 = vector.load %arg1[%c2, %c0_4, %c0_5] : memref<3x8x128xi32, #tpu.memory_space<vmem>>, vector<1x8x128xi32>
    %10 = vector.shape_cast %9 : vector<1x8x128xi32> to vector<8x128xi32>
    %11 = arith.addi %8, %10 : vector<8x128xi32>
    %c0_6 = arith.constant 0 : index
    %c0_7 = arith.constant 0 : index
    %12 = vector.load %arg2[%c0_6, %c0_7] : memref<8x128xi32, #tpu.memory_space<vmem>>, vector<8x128xi32>
    tpu.vector_store %arg2[%c0_6, %c0_7], %11 {strides = array<i32>} : memref<8x128xi32, #tpu.memory_space<vmem>>, vector<8x128xi32>,
    return
  }
  func.func @transform_0(%arg0: i32) -> (i32, i32, i32) {
    %c0_i32 = arith.constant 0 : i32
    %c0_i32_0 = arith.constant 0 : i32
    %c0_i32_1 = arith.constant 0 : i32
    return %c0_i32, %arg0, %c0_i32_0 : i32, i32, i32
  }
  func.func @transform_1(%arg0: i32) -> (i32, i32) {
    %c0_i32 = arith.constant 0 : i32
    %c0_i32_0 = arith.constant 0 : i32
    return %arg0, %c0_i32 : i32, i32
  }
}

</mosaic_0001>

<llo_original>
// kernel: tpu_custom_call.1
$region0: #{tpu_custom_call.1}
  #allocation0 [shape = 'u32[]', space=smem, size = 0x4, offset = 0x4, fixed_abs, tag = 'smem constant byte address 0x4 - core index']
  #allocation1 [shape = 'u32[72,128]{1,0:T(1,128)}', space=vmem, size = 0x9000, scoped, tag = 'internal scratch']
  %s0 = inlined_call_operand.hbm [shape: s32[3,8,128], index: 0, kind: input, shape index: {}]
  %s1 = inlined_call_operand.hbm [shape: s32[8,128], index: 1, kind: output, shape index: {}]
  %s2 = sld [smem:[#allocation0]]
  $region18: #{tpu_custom_call.1} parent=0
    _
  %s4 = ssub.s32 1, %s2
  %s5 = scalar_select 0, %s4, %s2
  $region1: #{tpu_custom_call.1} parent=0
    #allocation2 [shape = 'u8[12288]{0}', space=vmem, size = 0x3000, scoped, tag = 'input window, operand 0, single buffered']
    #allocation3 [shape = 's32[1]{0}', space=sflag, size = 0x4, scoped, tag = 'scoped memory for tpu_custom_call.1']
    #allocation4 [shape = 's32[1]{0}', space=sflag, size = 0x4, scoped, tag = 'scoped memory for tpu_custom_call.1']
    #allocation5 [shape = 'u8[4096]{0}', space=vmem, size = 0x1000, scoped, tag = 'output window, operand 0, single buffered']
    %6 = vsyncpa [#allocation3], 0
    %7 = vsyncpa [#allocation4], 0
    // Predicated region
    $region2: #{tpu_custom_call.1} parent=1 // pred_check
      _
    $region3: #{tpu_custom_call.1} parent=1 // pred_check_branch
      %9 = sbr.rel (0) target = $region5
    $region4: #{tpu_custom_call.1} parent=1 // pred_region
      %11 = vsyncadd [#allocation3], 0
      %s12 = sshll.u32 %s0, 4
      %s13 = int_to_ptr.hbm [resolvable:$true] %s12
      %s14 = sshll.u32 [#allocation2], 4
      %s15 = int_to_ptr.vmem [resolvable:$true] %s14
      %20 = dma.hbm_to_vmem [thread:$0]  %s13, 384, %s15, [#allocation3], 128, 128, 8
    $region5: #{tpu_custom_call.1} parent=1 // pred_fallthru
      _
    // Predicated region
    $region6: #{tpu_custom_call.1} parent=1 // pred_check
      _
    $region7: #{tpu_custom_call.1} parent=1 // pred_check_branch
      %22 = sbr.rel (0) target = $region9
    $region8: #{tpu_custom_call.1} parent=1 // pred_region
      %24 = dma.done [#allocation3], 384
    $region9: #{tpu_custom_call.1} parent=1 // pred_fallthru
      _
    %v25 = vld [vmem:[#allocation2] sm:$0xff]
    %v26 = vmul.u32 %v25, 6
    %s27 = scalar_lea.vmem [#allocation2], 8
    %v28 = vld [vmem:[%s27] sm:$0xff]
    %v29 = vmul.u32 %v28, 3
    %v30 = vadd.s32 %v26, %v29
    %s31 = scalar_lea.vmem [#allocation2], 16
    %v32 = vld [vmem:[%s31] sm:$0xff]
    %v33 = vadd.s32 %v30, %v32
    %34 = vst [vmem:[#allocation5] sm:$0xff] %v33
    // Predicated region
    $region10: #{tpu_custom_call.1} parent=1 // pred_check
      _
    $region11: #{tpu_custom_call.1} parent=1 // pred_check_branch
      %36 = sbr.rel (0) target = $region13
    $region12: #{tpu_custom_call.1} parent=1 // pred_region
      %38 = vsyncadd [#allocation4], 0
      %s40 = sshll.u32 [#allocation5], 4
      %s41 = int_to_ptr.vmem [resolvable:$true] %s40
      %s42 = sshll.u32 %s1, 4
      %s43 = int_to_ptr.hbm [resolvable:$true] %s42
      %45 = dma.vmem_to_hbm [thread:$0]  %s41, 128, %s43, [#allocation4]
    $region13: #{tpu_custom_call.1} parent=1 // pred_fallthru
      _
    // Predicated region
    $region14: #{tpu_custom_call.1} parent=1 // pred_check
      _
    $region15: #{tpu_custom_call.1} parent=1 // pred_check_branch
      %47 = sbr.rel (0) target = $region17
    $region16: #{tpu_custom_call.1} parent=1 // pred_region
      %49 = dma.done [#allocation4], 128
    $region17: #{tpu_custom_call.1} parent=1 // pred_fallthru
      _
    %50 = vsyncpa [#allocation3], 1
    %51 = vsyncpa [#allocation4], 1

</llo_original>
